<compile_context>
chip_gen: v5e
topology: v5e:2x2
jax: 0.10.0
libtpu: 0.0.40
codegen_flags: <defaults>
</compile_context>

<pallas_src>
import jax
import jax.numpy as jnp
from jax import lax
from jax.experimental import pallas as pl
from jax.experimental.pallas import tpu as pltpu

# Synthetic sizes (module init: 6 seed nodes + image/word nodes; word_dim=opt.word_dim)
N_NODES = 32            # total graph nodes after graph_update
D_EMBED = 32            # opt.word_dim
PAD = 128               # lane/sublane-dense padded extent for all MXU operands
STEPS_PER_CHECK = 1000  # matches the original: 1000 mean passes per convergence check
MAX_OUTER = 64          # safety cap on convergence checks (converges in ~2 here)
TOL = 0.1               # |delta sum-of-squares| threshold from the original module


def _mm(a, b):
    return jnp.dot(a, b, preferred_element_type=jnp.float32)


# ---------------------------------------------------------------------------
# Kernel 1: P = A^1000, computed once per graph structure (hoisted out of
# forward()).  Operates on the lane-dense (PAD, PAD) zero-padded adjacency;
# the padded block structure [[A,0],[0,0]] is preserved by every product.
# ---------------------------------------------------------------------------
def _matpow_kernel(adj_ref, p_ref):
    a = adj_ref[...]                                    # (PAD, PAD) f32
    factors = []
    cur = a
    nbits = STEPS_PER_CHECK.bit_length()
    for bit in range(nbits):                            # 9 serial squarings
        if (STEPS_PER_CHECK >> bit) & 1:
            factors.append(cur)                         # set-bit factor A^(2^bit)
        if bit + 1 < nbits:
            cur = _mm(cur, cur)
    # Tree-reduce the 6 set-bit factors of 1000 (depth 3 instead of 6 serial).
    while len(factors) > 1:
        nxt = []
        for i in range(0, len(factors) - 1, 2):
            nxt.append(_mm(factors[i], factors[i + 1]))
        if len(factors) % 2 == 1:
            nxt.append(factors[-1])
        factors = nxt
    p_ref[...] = factors[0]


@jax.jit
def compute_adjacency_power(adj_pad):
    return pl.pallas_call(
        _matpow_kernel,
        out_shape=jax.ShapeDtypeStruct((PAD, PAD), jnp.float32),
        in_specs=[pl.BlockSpec((PAD, PAD), lambda: (0, 0))],
        out_specs=pl.BlockSpec((PAD, PAD), lambda: (0, 0)),
    )(adj_pad)


# ---------------------------------------------------------------------------
# Kernel 2: the per-forward convergence loop, entirely on device.
# Original:  while True: a = ss(R); R <- A^1000 R; if |a - ss(R)| <= 0.1: break
# Here: real lax.while_loop; ss is carried so each block is 1 matmul + 1
# reduction; converged iterations are skipped, not frozen-and-replayed.
# ---------------------------------------------------------------------------
def _converge_kernel(p_ref, rep_ref, out_ref, iters_ref, delta_ref):
    p = p_ref[...]                       # (PAD, PAD)  == A^1000 (padded)
    r0 = rep_ref[...]                    # (PAD, PAD)  padded representations
    ss0 = jnp.sum(r0 * r0)

    def cond(state):
        _, _, n_it, delta = state
        return jnp.logical_and(delta > TOL, n_it < MAX_OUTER)

    def body(state):
        r, ss_prev, n_it, _ = state
        r_new = _mm(p, r)                                # one block of 1000 passes
        ss_new = jnp.sum(r_new * r_new)
        return r_new, ss_new, n_it + 1, jnp.abs(ss_prev - ss_new)

    r_fin, _, n_it, delta = lax.while_loop(
        cond, body, (r0, ss0, jnp.int32(0), jnp.float32(jnp.inf)))

    out_ref[...] = r_fin                 # aliased with rep input -> in-place update
    iters_ref[0] = n_it                  # scalar diagnostics exit through SMEM
    delta_ref[0] = delta


def _graph_mean_forward(p_pad, rep_pad):
    return pl.pallas_call(
        _converge_kernel,
        out_shape=(
            jax.ShapeDtypeStruct((PAD, PAD), jnp.float32),
            jax.ShapeDtypeStruct((1,), jnp.int32),
            jax.ShapeDtypeStruct((1,), jnp.float32),
        ),
        in_specs=[
            pl.BlockSpec((PAD, PAD), lambda: (0, 0)),
            pl.BlockSpec((PAD, PAD), lambda: (0, 0)),
        ],
        out_specs=(
            pl.BlockSpec((PAD, PAD), lambda: (0, 0)),
            pl.BlockSpec(memory_space=pltpu.MemorySpace.SMEM),
            pl.BlockSpec(memory_space=pltpu.MemorySpace.SMEM),
        ),
        input_output_aliases={1: 0},     # R updated in place (no fresh HBM buffer)
    )(p_pad, rep_pad)


graph_mean_forward = jax.jit(_graph_mean_forward, donate_argnums=(1,))


# ---------------------------------------------------------------------------
# Host-side construction & reference
# ---------------------------------------------------------------------------
def build_normalized_adjacency(key, n_nodes):
    """Deterministic synthetic directed graph (stand-in for graph_update edges),
    normalized the way DGL's copy_src + mean reduce behaves."""
    adj = jax.random.bernoulli(key, p=3.0 / n_nodes, shape=(n_nodes, n_nodes))
    adj = adj & (~jnp.eye(n_nodes, dtype=bool))
    adj = adj.astype(jnp.float32)
    in_deg = adj.sum(axis=1, keepdims=True)                      # (N, 1)
    has_in = in_deg > 0
    a_norm = jnp.where(has_in, adj / jnp.maximum(in_deg, 1.0), 0.0)
    # nodes with no in-edges keep their own representation (identity row)
    a_norm = a_norm + jnp.where(has_in, 0.0, 1.0) * jnp.eye(n_nodes, dtype=jnp.float32)
    return a_norm


def _matrix_power_ref(a, e):
    result, base = None, a
    while e > 0:
        if e & 1:
            result = base if result is None else jnp.dot(
                result, base, precision=lax.Precision.HIGHEST)
        e >>= 1
        if e:
            base = jnp.dot(base, base, precision=lax.Precision.HIGHEST)
    return result


def _reference_forward(adj_norm, rep):
    """Pure-JAX (XLA, highest precision) reference mirroring the kernel math."""
    p = _matrix_power_ref(adj_norm, STEPS_PER_CHECK)
    r = rep
    ss_prev = float(jnp.sum(r * r))
    n = 0
    delta = float("inf")
    while delta > TOL and n < MAX_OUTER:
        r = jnp.dot(p, r, precision=lax.Precision.HIGHEST)
        ss_new = float(jnp.sum(r * r))
        delta = abs(ss_prev - ss_new)
        ss_prev = ss_new
        n += 1
    return r, n


class GraphPallas:
    """JAX/Pallas counterpart of the PyTorch `Graph` module (mean mode)."""

    def __init__(self, key):
        k_rep, k_adj = jax.random.split(key)
        # self.representation = torch.randn(num_nodes, embedding)
        rep = jax.random.normal(k_rep, (N_NODES, D_EMBED), dtype=jnp.float32)
        self.adj_norm = build_normalized_adjacency(k_adj, N_NODES)

        # Persistent lane/sublane-dense device state: padded ONCE here, never
        # in the per-forward path.
        self.representation_pad = (
            jnp.zeros((PAD, PAD), jnp.float32).at[:N_NODES, :D_EMBED].set(rep))
        adj_pad = (
            jnp.zeros((PAD, PAD), jnp.float32)
            .at[:N_NODES, :N_NODES].set(self.adj_norm))
        # P = A^1000 depends only on the fixed graph structure: compute once.
        self.p_pad = compute_adjacency_power(adj_pad)

        self.last_num_checks = None      # device scalars; no forced host sync
        self.last_delta = None

    @property
    def representation(self):
        return self.representation_pad[:N_NODES, :D_EMBED]

    def forward(self, mode):
        if mode != "mean":
            # TODO(synk): the non-'mean' GMesReduce path (contrastive loss,
            # autograd backward, random negative sampling, clip_grad_norm_) has
            # no clean forward-only Pallas equivalent and is not implemented.
            raise NotImplementedError("only mode='mean' is implemented")
        out_pad, n_checks, delta = graph_mean_forward(
            self.p_pad, self.representation_pad)
        self.representation_pad = out_pad            # aliased buffer, in place
        self.last_num_checks = n_checks[0]
        self.last_delta = delta[0]
        return out_pad[:N_NODES, :D_EMBED]


if __name__ == "__main__":
    key = jax.random.PRNGKey(0)
    graph = GraphPallas(key)
    rep0 = graph.representation          # (N, D) copy of the initial state

    out = graph.forward("mean")
    out = jax.block_until_ready(out)

    assert out.shape == (N_NODES, D_EMBED)
    assert bool(jnp.all(jnp.isfinite(out)))

    n_checks = int(graph.last_num_checks)
    last_delta = float(graph.last_delta)
    assert 1 <= n_checks <= MAX_OUTER
    assert last_delta <= TOL or n_checks == MAX_OUTER

    # numerical reference for the fused kernel path
    ref, n_ref = _reference_forward(graph.adj_norm, rep0)
    max_err = float(jnp.max(jnp.abs(out - ref)))
    assert max_err < 1e-2, f"kernel vs reference mismatch: {max_err}"
    assert abs(n_checks - n_ref) <= 1, (n_checks, n_ref)

    print("KERNEL_OK")
</pallas_src>

<mosaic_0001>
module attributes {stable_mosaic.version = 11 : i64} {
  func.func @_matpow_kernel(%arg0: memref<128x128xf32, #tpu.memory_space<vmem>>, %arg1: memref<128x128xf32, #tpu.memory_space<vmem>>) attributes {dimension_semantics = [], scalar_prefetch = 0 : i64, scratch_operands = 0 : i64, tpu.core_type = #tpu.core_type<tc>} {
    %c0 = arith.constant 0 : index
    %c0_0 = arith.constant 0 : index
    %0 = vector.load %arg0[%c0, %c0_0] : memref<128x128xf32, #tpu.memory_space<vmem>>, vector<128x128xf32>
    %cst = arith.constant dense<0.000000e+00> : vector<128x128xf32>
    %1 = tpu.matmul %0, %0, %cst {dimension_numbers = #tpu.dot_dimension_numbers<[1], [0], [0], [1], [0, 0, 1, 1], [], []>} : vector<128x128xf32>, vector<128x128xf32>, vector<128x128xf32> -> vector<128x128xf32>
    %cst_1 = arith.constant dense<0.000000e+00> : vector<128x128xf32>
    %2 = tpu.matmul %1, %1, %cst_1 {dimension_numbers = #tpu.dot_dimension_numbers<[1], [0], [0], [1], [0, 0, 1, 1], [], []>} : vector<128x128xf32>, vector<128x128xf32>, vector<128x128xf32> -> vector<128x128xf32>
    %cst_2 = arith.constant dense<0.000000e+00> : vector<128x128xf32>
    %3 = tpu.matmul %2, %2, %cst_2 {dimension_numbers = #tpu.dot_dimension_numbers<[1], [0], [0], [1], [0, 0, 1, 1], [], []>} : vector<128x128xf32>, vector<128x128xf32>, vector<128x128xf32> -> vector<128x128xf32>
    %cst_3 = arith.constant dense<0.000000e+00> : vector<128x128xf32>
    %4 = tpu.matmul %3, %3, %cst_3 {dimension_numbers = #tpu.dot_dimension_numbers<[1], [0], [0], [1], [0, 0, 1, 1], [], []>} : vector<128x128xf32>, vector<128x128xf32>, vector<128x128xf32> -> vector<128x128xf32>
    %cst_4 = arith.constant dense<0.000000e+00> : vector<128x128xf32>
    %5 = tpu.matmul %4, %4, %cst_4 {dimension_numbers = #tpu.dot_dimension_numbers<[1], [0], [0], [1], [0, 0, 1, 1], [], []>} : vector<128x128xf32>, vector<128x128xf32>, vector<128x128xf32> -> vector<128x128xf32>
    %cst_5 = arith.constant dense<0.000000e+00> : vector<128x128xf32>
    %6 = tpu.matmul %5, %5, %cst_5 {dimension_numbers = #tpu.dot_dimension_numbers<[1], [0], [0], [1], [0, 0, 1, 1], [], []>} : vector<128x128xf32>, vector<128x128xf32>, vector<128x128xf32> -> vector<128x128xf32>
    %cst_6 = arith.constant dense<0.000000e+00> : vector<128x128xf32>
    %7 = tpu.matmul %6, %6, %cst_6 {dimension_numbers = #tpu.dot_dimension_numbers<[1], [0], [0], [1], [0, 0, 1, 1], [], []>} : vector<128x128xf32>, vector<128x128xf32>, vector<128x128xf32> -> vector<128x128xf32>
    %cst_7 = arith.constant dense<0.000000e+00> : vector<128x128xf32>
    %8 = tpu.matmul %7, %7, %cst_7 {dimension_numbers = #tpu.dot_dimension_numbers<[1], [0], [0], [1], [0, 0, 1, 1], [], []>} : vector<128x128xf32>, vector<128x128xf32>, vector<128x128xf32> -> vector<128x128xf32>
    %cst_8 = arith.constant dense<0.000000e+00> : vector<128x128xf32>
    %9 = tpu.matmul %8, %8, %cst_8 {dimension_numbers = #tpu.dot_dimension_numbers<[1], [0], [0], [1], [0, 0, 1, 1], [], []>} : vector<128x128xf32>, vector<128x128xf32>, vector<128x128xf32> -> vector<128x128xf32>
    %cst_9 = arith.constant dense<0.000000e+00> : vector<128x128xf32>
    %10 = tpu.matmul %3, %5, %cst_9 {dimension_numbers = #tpu.dot_dimension_numbers<[1], [0], [0], [1], [0, 0, 1, 1], [], []>} : vector<128x128xf32>, vector<128x128xf32>, vector<128x128xf32> -> vector<128x128xf32>
    %cst_10 = arith.constant dense<0.000000e+00> : vector<128x128xf32>
    %11 = tpu.matmul %6, %7, %cst_10 {dimension_numbers = #tpu.dot_dimension_numbers<[1], [0], [0], [1], [0, 0, 1, 1], [], []>} : vector<128x128xf32>, vector<128x128xf32>, vector<128x128xf32> -> vector<128x128xf32>
    %cst_11 = arith.constant dense<0.000000e+00> : vector<128x128xf32>
    %12 = tpu.matmul %8, %9, %cst_11 {dimension_numbers = #tpu.dot_dimension_numbers<[1], [0], [0], [1], [0, 0, 1, 1], [], []>} : vector<128x128xf32>, vector<128x128xf32>, vector<128x128xf32> -> vector<128x128xf32>
    %cst_12 = arith.constant dense<0.000000e+00> : vector<128x128xf32>
    %13 = tpu.matmul %10, %11, %cst_12 {dimension_numbers = #tpu.dot_dimension_numbers<[1], [0], [0], [1], [0, 0, 1, 1], [], []>} : vector<128x128xf32>, vector<128x128xf32>, vector<128x128xf32> -> vector<128x128xf32>
    %cst_13 = arith.constant dense<0.000000e+00> : vector<128x128xf32>
    %14 = tpu.matmul %13, %12, %cst_13 {dimension_numbers = #tpu.dot_dimension_numbers<[1], [0], [0], [1], [0, 0, 1, 1], [], []>} : vector<128x128xf32>, vector<128x128xf32>, vector<128x128xf32> -> vector<128x128xf32>
    %c0_14 = arith.constant 0 : index
    %c0_15 = arith.constant 0 : index
    %15 = vector.load %arg1[%c0_14, %c0_15] : memref<128x128xf32, #tpu.memory_space<vmem>>, vector<128x128xf32>
    tpu.vector_store %arg1[%c0_14, %c0_15], %14 {strides = array<i32>} : memref<128x128xf32, #tpu.memory_space<vmem>>, vector<128x128xf32>,
    return
  }
}

</mosaic_0001>

<llo_original>
// kernel: compute_adjacency_power.1
$region0: #{compute_adjacency_power.1}
  #allocation0 [shape = 'u32[]', space=smem, size = 0x4, offset = 0x4, fixed_abs, tag = 'smem constant byte address 0x4 - core index']
  #allocation1 [shape = 'u32[72,128]{1,0:T(1,128)}', space=vmem, size = 0x9000, scoped, tag = 'internal scratch']
  %s0 = inlined_call_operand.hbm [shape: f32[128,128], index: 0, kind: input, shape index: {}]
  %s1 = inlined_call_operand.hbm [shape: f32[128,128], index: 1, kind: output, shape index: {}]
  %s2 = sld [smem:[#allocation0]]
  $region18: #{compute_adjacency_power.1} parent=0
    _
  %s4 = ssub.s32 1, %s2
  %s5 = scalar_select 0, %s4, %s2
  $region1: #{compute_adjacency_power.1} parent=0
    #allocation2 [shape = 'u8[65536]{0}', space=vmem, size = 0x10000, scoped, tag = 'input window, operand 0, single buffered']
    #allocation3 [shape = 's32[1]{0}', space=sflag, size = 0x4, scoped, tag = 'scoped memory for compute_adjacency_power.1']
    #allocation4 [shape = 's32[1]{0}', space=sflag, size = 0x4, scoped, tag = 'scoped memory for compute_adjacency_power.1']
    #allocation5 [shape = 'u8[65536]{0}', space=vmem, size = 0x10000, scoped, tag = 'output window, operand 0, single buffered']
    %6 = vsyncpa [#allocation3], 0
    %7 = vsyncpa [#allocation4], 0
    // Predicated region
    $region2: #{compute_adjacency_power.1} parent=1 // pred_check
      _
    $region3: #{compute_adjacency_power.1} parent=1 // pred_check_branch
      %9 = sbr.rel (0) target = $region5
    $region4: #{compute_adjacency_power.1} parent=1 // pred_region
      %11 = vsyncadd [#allocation3], 0
      %s12 = sshll.u32 %s0, 4
      %s13 = int_to_ptr.hbm [resolvable:$true] %s12
      %s14 = sshll.u32 [#allocation2], 4
      %s15 = int_to_ptr.vmem [resolvable:$true] %s14
      %20 = dma.hbm_to_vmem [thread:$0]  %s13, 2048, %s15, [#allocation3], 128, 128, 8
    $region5: #{compute_adjacency_power.1} parent=1 // pred_fallthru
      _
    // Predicated region
    $region6: #{compute_adjacency_power.1} parent=1 // pred_check
      _
    $region7: #{compute_adjacency_power.1} parent=1 // pred_check_branch
      %22 = sbr.rel (0) target = $region9
    $region8: #{compute_adjacency_power.1} parent=1 // pred_region
      %24 = dma.done [#allocation3], 2048
    $region9: #{compute_adjacency_power.1} parent=1 // pred_fallthru
      _
    %v25 = vld [vmem:[#allocation2] sm:$0xff]
    %v26 = vld [vmem:[#allocation2 + $0x8] sm:$0xff]
    %v27 = vld [vmem:[#allocation2 + $0x10] sm:$0xff]
    %v28 = vld [vmem:[#allocation2 + $0x18] sm:$0xff]
    %v29 = vld [vmem:[#allocation2 + $0x20] sm:$0xff]
    %v30 = vld [vmem:[#allocation2 + $0x28] sm:$0xff]
    %v31 = vld [vmem:[#allocation2 + $0x30] sm:$0xff]
    %v32 = vld [vmem:[#allocation2 + $0x38] sm:$0xff]
    %v33 = vld [vmem:[#allocation2 + $0x40] sm:$0xff]
    %v34 = vld [vmem:[#allocation2 + $0x48] sm:$0xff]
    %v35 = vld [vmem:[#allocation2 + $0x50] sm:$0xff]
    %v36 = vld [vmem:[#allocation2 + $0x58] sm:$0xff]
    %v37 = vld [vmem:[#allocation2 + $0x60] sm:$0xff]
    %v38 = vld [vmem:[#allocation2 + $0x68] sm:$0xff]
    %v39 = vld [vmem:[#allocation2 + $0x70] sm:$0xff]
    %v40 = vld [vmem:[#allocation2 + $0x78] sm:$0xff]
    %41 = vmatpush.msra.mxu0 %v40
    %42 = vmatpush.msra.mxu0 %v39
    %43 = vmatpush.msra.mxu0 %v38
    %44 = vmatpush.msra.mxu0 %v37
    %45 = vmatpush.msra.mxu0 %v36
    %46 = vmatpush.msra.mxu0 %v35
    %47 = vmatpush.msra.mxu0 %v34
    %48 = vmatpush.msra.mxu0 %v33
    %49 = vmatpush.msra.mxu0 %v32
    %50 = vmatpush.msra.mxu0 %v31
    %51 = vmatpush.msra.mxu0 %v30
    %52 = vmatpush.msra.mxu0 %v29
    %53 = vmatpush.msra.mxu0 %v28
    %54 = vmatpush.msra.mxu0 %v27
    %55 = vmatpush.msra.mxu0 %v26
    %56 = vmatpush.msra.mxu0 %v25
    %57 = vmatmul.f32.gmra.mxu0 %v25
    %v58 = vpop.f32.mrf.mxu0
    %v59 = vadd.f32 0.0, %v58
    %60 = vmatmul.f32.gmra.mxu0 %v26
    %v61 = vpop.f32.mrf.mxu0
    %v62 = vadd.f32 0.0, %v61
    %63 = vmatmul.f32.gmra.mxu0 %v27
    %v64 = vpop.f32.mrf.mxu0
    %v65 = vadd.f32 0.0, %v64
    %66 = vmatmul.f32.gmra.mxu0 %v28
    %v67 = vpop.f32.mrf.mxu0
    %v68 = vadd.f32 0.0, %v67
    %69 = vmatmul.f32.gmra.mxu0 %v29
    %v70 = vpop.f32.mrf.mxu0
    %v71 = vadd.f32 0.0, %v70
    %72 = vmatmul.f32.gmra.mxu0 %v30
    %v73 = vpop.f32.mrf.mxu0
    %v74 = vadd.f32 0.0, %v73
    %75 = vmatmul.f32.gmra.mxu0 %v31
    %v76 = vpop.f32.mrf.mxu0
    %v77 = vadd.f32 0.0, %v76
    %78 = vmatmul.f32.gmra.mxu0 %v32
    %v79 = vpop.f32.mrf.mxu0
    %v80 = vadd.f32 0.0, %v79
    %81 = vmatmul.f32.gmra.mxu0 %v33
    %v82 = vpop.f32.mrf.mxu0
    %v83 = vadd.f32 0.0, %v82
    %84 = vmatmul.f32.gmra.mxu0 %v34
    %v85 = vpop.f32.mrf.mxu0
    %v86 = vadd.f32 0.0, %v85
    %87 = vmatmul.f32.gmra.mxu0 %v35
    %v88 = vpop.f32.mrf.mxu0
    %v89 = vadd.f32 0.0, %v88
    %90 = vmatmul.f32.gmra.mxu0 %v36
    %v91 = vpop.f32.mrf.mxu0
    %v92 = vadd.f32 0.0, %v91
    %93 = vmatmul.f32.gmra.mxu0 %v37
    %v94 = vpop.f32.mrf.mxu0
    %v95 = vadd.f32 0.0, %v94
    %96 = vmatmul.f32.gmra.mxu0 %v38
    %v97 = vpop.f32.mrf.mxu0
    %v98 = vadd.f32 0.0, %v97
    %99 = vmatmul.f32.gmra.mxu0 %v39
    %v100 = vpop.f32.mrf.mxu0
    %v101 = vadd.f32 0.0, %v100
    %102 = vmatmul.f32.gmra.mxu0 %v40
    %v103 = vpop.f32.mrf.mxu0
    %v104 = vadd.f32 0.0, %v103
    %105 = vdwg.mxu0
    %106 = vmatpush.msra.mxu0 %v104
    %107 = vmatpush.msra.mxu0 %v101
    %108 = vmatpush.msra.mxu0 %v98
    %109 = vmatpush.msra.mxu0 %v95
    %110 = vmatpush.msra.mxu0 %v92
    %111 = vmatpush.msra.mxu0 %v89
    %112 = vmatpush.msra.mxu0 %v86
    %113 = vmatpush.msra.mxu0 %v83
    %114 = vmatpush.msra.mxu0 %v80
    %115 = vmatpush.msra.mxu0 %v77
    %116 = vmatpush.msra.mxu0 %v74
    %117 = vmatpush.msra.mxu0 %v71
    %118 = vmatpush.msra.mxu0 %v68
    %119 = vmatpush.msra.mxu0 %v65
    %120 = vmatpush.msra.mxu0 %v62
    %121 = vmatpush.msra.mxu0 %v59
    %122 = vmatmul.f32.gmra.mxu0 %v59
    %v123 = vpop.f32.mrf.mxu0
    %v124 = vadd.f32 0.0, %v123
    %125 = vmatmul.f32.gmra.mxu0 %v62
    %v126 = vpop.f32.mrf.mxu0
    %v127 = vadd.f32 0.0, %v126
    %128 = vmatmul.f32.gmra.mxu0 %v65
    %v129 = vpop.f32.mrf.mxu0
    %v130 = vadd.f32 0.0, %v129
    %131 = vmatmul.f32.gmra.mxu0 %v68
    %v132 = vpop.f32.mrf.mxu0
    %v133 = vadd.f32 0.0, %v132
    %134 = vmatmul.f32.gmra.mxu0 %v71
    %v135 = vpop.f32.mrf.mxu0
    %v136 = vadd.f32 0.0, %v135
    %137 = vmatmul.f32.gmra.mxu0 %v74
    %v138 = vpop.f32.mrf.mxu0
    %v139 = vadd.f32 0.0, %v138
    %140 = vmatmul.f32.gmra.mxu0 %v77
    %v141 = vpop.f32.mrf.mxu0
    %v142 = vadd.f32 0.0, %v141
    %143 = vmatmul.f32.gmra.mxu0 %v80
    %v144 = vpop.f32.mrf.mxu0
    %v145 = vadd.f32 0.0, %v144
    %146 = vmatmul.f32.gmra.mxu0 %v83
    %v147 = vpop.f32.mrf.mxu0
    %v148 = vadd.f32 0.0, %v147
    %149 = vmatmul.f32.gmra.mxu0 %v86
    %v150 = vpop.f32.mrf.mxu0
    %v151 = vadd.f32 0.0, %v150
    %152 = vmatmul.f32.gmra.mxu0 %v89
    %v153 = vpop.f32.mrf.mxu0
    %v154 = vadd.f32 0.0, %v153
    %155 = vmatmul.f32.gmra.mxu0 %v92
    %v156 = vpop.f32.mrf.mxu0
    %v157 = vadd.f32 0.0, %v156
    %158 = vmatmul.f32.gmra.mxu0 %v95
    %v159 = vpop.f32.mrf.mxu0
    %v160 = vadd.f32 0.0, %v159
    %161 = vmatmul.f32.gmra.mxu0 %v98
    %v162 = vpop.f32.mrf.mxu0
    %v163 = vadd.f32 0.0, %v162
    %164 = vmatmul.f32.gmra.mxu0 %v101
    %v165 = vpop.f32.mrf.mxu0
    %v166 = vadd.f32 0.0, %v165
    %167 = vmatmul.f32.gmra.mxu0 %v104
    %v168 = vpop.f32.mrf.mxu0
    %v169 = vadd.f32 0.0, %v168
    %170 = vdwg.mxu0
    %171 = vmatpush.msra.mxu0 %v169
    %172 = vmatpush.msra.mxu0 %v166
    %173 = vmatpush.msra.mxu0 %v163
    %174 = vmatpush.msra.mxu0 %v160
    %175 = vmatpush.msra.mxu0 %v157
    %176 = vmatpush.msra.mxu0 %v154
    %177 = vmatpush.msra.mxu0 %v151
    %178 = vmatpush.msra.mxu0 %v148
    %179 = vmatpush.msra.mxu0 %v145
    %180 = vmatpush.msra.mxu0 %v142
    %181 = vmatpush.msra.mxu0 %v139
    %182 = vmatpush.msra.mxu0 %v136
    %183 = vmatpush.msra.mxu0 %v133
    %184 = vmatpush.msra.mxu0 %v130
    %185 = vmatpush.msra.mxu0 %v127
    %186 = vmatpush.msra.mxu0 %v124
    %187 = vmatmul.f32.gmra.mxu0 %v124
    %v188 = vpop.f32.mrf.mxu0
    %v189 = vadd.f32 0.0, %v188
    %190 = vmatmul.f32.gmra.mxu0 %v127
    %v191 = vpop.f32.mrf.mxu0
    %v192 = vadd.f32 0.0, %v191
    %193 = vmatmul.f32.gmra.mxu0 %v130
    %v194 = vpop.f32.mrf.mxu0
    %v195 = vadd.f32 0.0, %v194
    %196 = vmatmul.f32.gmra.mxu0 %v133
    %v197 = vpop.f32.mrf.mxu0
    %v198 = vadd.f32 0.0, %v197
    %199 = vmatmul.f32.gmra.mxu0 %v136
    %v200 = vpop.f32.mrf.mxu0
    %v201 = vadd.f32 0.0, %v200
    %202 = vmatmul.f32.gmra.mxu0 %v139
    %v203 = vpop.f32.mrf.mxu0
    %v204 = vadd.f32 0.0, %v203
    %205 = vmatmul.f32.gmra.mxu0 %v142
    %v206 = vpop.f32.mrf.mxu0
    %v207 = vadd.f32 0.0, %v206
    %208 = vmatmul.f32.gmra.mxu0 %v145
    %v209 = vpop.f32.mrf.mxu0
    %v210 = vadd.f32 0.0, %v209
    %211 = vmatmul.f32.gmra.mxu0 %v148
    %v212 = vpop.f32.mrf.mxu0
    %v213 = vadd.f32 0.0, %v212
    %214 = vmatmul.f32.gmra.mxu0 %v151
    %v215 = vpop.f32.mrf.mxu0
    %v216 = vadd.f32 0.0, %v215
    %217 = vmatmul.f32.gmra.mxu0 %v154
    %v218 = vpop.f32.mrf.mxu0
    %v219 = vadd.f32 0.0, %v218
    %220 = vmatmul.f32.gmra.mxu0 %v157
    %v221 = vpop.f32.mrf.mxu0
    %v222 = vadd.f32 0.0, %v221
    %223 = vmatmul.f32.gmra.mxu0 %v160
    %v224 = vpop.f32.mrf.mxu0
    %v225 = vadd.f32 0.0, %v224
    %226 = vmatmul.f32.gmra.mxu0 %v163
    %v227 = vpop.f32.mrf.mxu0
    %v228 = vadd.f32 0.0, %v227
    %229 = vmatmul.f32.gmra.mxu0 %v166
    %v230 = vpop.f32.mrf.mxu0
    %v231 = vadd.f32 0.0, %v230
    %232 = vmatmul.f32.gmra.mxu0 %v169
    %v233 = vpop.f32.mrf.mxu0
    %v234 = vadd.f32 0.0, %v233
    %235 = vdwg.mxu0
    %236 = vmatpush.msra.mxu0 %v234
    %237 = vmatpush.msra.mxu0 %v231
    %238 = vmatpush.msra.mxu0 %v228
    %239 = vmatpush.msra.mxu0 %v225
    %240 = vmatpush.msra.mxu0 %v222
    %241 = vmatpush.msra.mxu0 %v219
    %242 = vmatpush.msra.mxu0 %v216
    %243 = vmatpush.msra.mxu0 %v213
    %244 = vmatpush.msra.mxu0 %v210
    %245 = vmatpush.msra.mxu0 %v207
    %246 = vmatpush.msra.mxu0 %v204
    %247 = vmatpush.msra.mxu0 %v201
    %248 = vmatpush.msra.mxu0 %v198
    %249 = vmatpush.msra.mxu0 %v195
    %250 = vmatpush.msra.mxu0 %v192
    %251 = vmatpush.msra.mxu0 %v189
    %252 = vmatmul.f32.gmra.mxu0 %v189
    %v253 = vpop.f32.mrf.mxu0
    %v254 = vadd.f32 0.0, %v253
    %255 = vmatmul.f32.gmra.mxu0 %v192
    %v256 = vpop.f32.mrf.mxu0
    %v257 = vadd.f32 0.0, %v256
    %258 = vmatmul.f32.gmra.mxu0 %v195
    %v259 = vpop.f32.mrf.mxu0
    %v260 = vadd.f32 0.0, %v259
    %261 = vmatmul.f32.gmra.mxu0 %v198
    %v262 = vpop.f32.mrf.mxu0
    %v263 = vadd.f32 0.0, %v262
    %264 = vmatmul.f32.gmra.mxu0 %v201
    %v265 = vpop.f32.mrf.mxu0
    %v266 = vadd.f32 0.0, %v265
    %267 = vmatmul.f32.gmra.mxu0 %v204
    %v268 = vpop.f32.mrf.mxu0
    %v269 = vadd.f32 0.0, %v268
    %270 = vmatmul.f32.gmra.mxu0 %v207
    %v271 = vpop.f32.mrf.mxu0
    %v272 = vadd.f32 0.0, %v271
    %273 = vmatmul.f32.gmra.mxu0 %v210
    %v274 = vpop.f32.mrf.mxu0
    %v275 = vadd.f32 0.0, %v274
    %276 = vmatmul.f32.gmra.mxu0 %v213
    %v277 = vpop.f32.mrf.mxu0
    %v278 = vadd.f32 0.0, %v277
    %279 = vmatmul.f32.gmra.mxu0 %v216
    %v280 = vpop.f32.mrf.mxu0
    %v281 = vadd.f32 0.0, %v280
    %282 = vmatmul.f32.gmra.mxu0 %v219
    %v283 = vpop.f32.mrf.mxu0
    %v284 = vadd.f32 0.0, %v283
    %285 = vmatmul.f32.gmra.mxu0 %v222
    %v286 = vpop.f32.mrf.mxu0
    %v287 = vadd.f32 0.0, %v286
    %288 = vmatmul.f32.gmra.mxu0 %v225
    %v289 = vpop.f32.mrf.mxu0
    %v290 = vadd.f32 0.0, %v289
    %291 = vmatmul.f32.gmra.mxu0 %v228
    %v292 = vpop.f32.mrf.mxu0
    %v293 = vadd.f32 0.0, %v292
    %294 = vmatmul.f32.gmra.mxu0 %v231
    %v295 = vpop.f32.mrf.mxu0
    %v296 = vadd.f32 0.0, %v295
    %297 = vmatmul.f32.gmra.mxu0 %v234
    %v298 = vpop.f32.mrf.mxu0
    %v299 = vadd.f32 0.0, %v298
    %300 = vdwg.mxu0
    %301 = vmatpush.msra.mxu0 %v299
    %302 = vmatpush.msra.mxu0 %v296
    %303 = vmatpush.msra.mxu0 %v293
    %304 = vmatpush.msra.mxu0 %v290
    %305 = vmatpush.msra.mxu0 %v287
    %306 = vmatpush.msra.mxu0 %v284
    %307 = vmatpush.msra.mxu0 %v281
    %308 = vmatpush.msra.mxu0 %v278
    %309 = vmatpush.msra.mxu0 %v275
    %310 = vmatpush.msra.mxu0 %v272
    %311 = vmatpush.msra.mxu0 %v269
    %312 = vmatpush.msra.mxu0 %v266
    %313 = vmatpush.msra.mxu0 %v263
    %314 = vmatpush.msra.mxu0 %v260
    %315 = vmatpush.msra.mxu0 %v257
    %316 = vmatpush.msra.mxu0 %v254
    %317 = vmatmul.f32.gmra.mxu0 %v254
    %v318 = vpop.f32.mrf.mxu0
    %v319 = vadd.f32 0.0, %v318
    %320 = vmatmul.f32.gmra.mxu0 %v257
    %v321 = vpop.f32.mrf.mxu0
    %v322 = vadd.f32 0.0, %v321
    %323 = vmatmul.f32.gmra.mxu0 %v260
    %v324 = vpop.f32.mrf.mxu0
    %v325 = vadd.f32 0.0, %v324
    %326 = vmatmul.f32.gmra.mxu0 %v263
    %v327 = vpop.f32.mrf.mxu0
    %v328 = vadd.f32 0.0, %v327
    %329 = vmatmul.f32.gmra.mxu0 %v266
    %v330 = vpop.f32.mrf.mxu0
    %v331 = vadd.f32 0.0, %v330
    %332 = vmatmul.f32.gmra.mxu0 %v269
    %v333 = vpop.f32.mrf.mxu0
    %v334 = vadd.f32 0.0, %v333
    %335 = vmatmul.f32.gmra.mxu0 %v272
    %v336 = vpop.f32.mrf.mxu0
    %v337 = vadd.f32 0.0, %v336
    %338 = vmatmul.f32.gmra.mxu0 %v275
    %v339 = vpop.f32.mrf.mxu0
    %v340 = vadd.f32 0.0, %v339
    %341 = vmatmul.f32.gmra.mxu0 %v278
    %v342 = vpop.f32.mrf.mxu0
    %v343 = vadd.f32 0.0, %v342
    %344 = vmatmul.f32.gmra.mxu0 %v281
    %v345 = vpop.f32.mrf.mxu0
    %v346 = vadd.f32 0.0, %v345
    %347 = vmatmul.f32.gmra.mxu0 %v284
    %v348 = vpop.f32.mrf.mxu0
    %v349 = vadd.f32 0.0, %v348
    %350 = vmatmul.f32.gmra.mxu0 %v287
    %v351 = vpop.f32.mrf.mxu0
    %v352 = vadd.f32 0.0, %v351
    %353 = vmatmul.f32.gmra.mxu0 %v290
    %v354 = vpop.f32.mrf.mxu0
    %v355 = vadd.f32 0.0, %v354
    %356 = vmatmul.f32.gmra.mxu0 %v293
    %v357 = vpop.f32.mrf.mxu0
    %v358 = vadd.f32 0.0, %v357
    %359 = vmatmul.f32.gmra.mxu0 %v296
    %v360 = vpop.f32.mrf.mxu0
    %v361 = vadd.f32 0.0, %v360
    %362 = vmatmul.f32.gmra.mxu0 %v299
    %v363 = vpop.f32.mrf.mxu0
    %v364 = vadd.f32 0.0, %v363
    %365 = vdwg.mxu0
    %366 = vmatpush.msra.mxu0 %v364
    %367 = vmatpush.msra.mxu0 %v361
    %368 = vmatpush.msra.mxu0 %v358
    %369 = vmatpush.msra.mxu0 %v355
    %370 = vmatpush.msra.mxu0 %v352
    %371 = vmatpush.msra.mxu0 %v349
    %372 = vmatpush.msra.mxu0 %v346
    %373 = vmatpush.msra.mxu0 %v343
    %374 = vmatpush.msra.mxu0 %v340
    %375 = vmatpush.msra.mxu0 %v337
    %376 = vmatpush.msra.mxu0 %v334
    %377 = vmatpush.msra.mxu0 %v331
    %378 = vmatpush.msra.mxu0 %v328
    %379 = vmatpush.msra.mxu0 %v325
    %380 = vmatpush.msra.mxu0 %v322
    %381 = vmatpush.msra.mxu0 %v319
    %382 = vmatmul.f32.gmra.mxu0 %v319
    %v383 = vpop.f32.mrf.mxu0
    %v384 = vadd.f32 0.0, %v383
    %385 = vmatmul.f32.gmra.mxu0 %v322
    %v386 = vpop.f32.mrf.mxu0
    %v387 = vadd.f32 0.0, %v386
    %388 = vmatmul.f32.gmra.mxu0 %v325
    %v389 = vpop.f32.mrf.mxu0
    %v390 = vadd.f32 0.0, %v389
    %391 = vmatmul.f32.gmra.mxu0 %v328
    %v392 = vpop.f32.mrf.mxu0
    %v393 = vadd.f32 0.0, %v392
    %394 = vmatmul.f32.gmra.mxu0 %v331
    %v395 = vpop.f32.mrf.mxu0
    %v396 = vadd.f32 0.0, %v395
    %397 = vmatmul.f32.gmra.mxu0 %v334
    %v398 = vpop.f32.mrf.mxu0
    %v399 = vadd.f32 0.0, %v398
    %400 = vmatmul.f32.gmra.mxu0 %v337
    %v401 = vpop.f32.mrf.mxu0
    %v402 = vadd.f32 0.0, %v401
    %403 = vmatmul.f32.gmra.mxu0 %v340
    %v404 = vpop.f32.mrf.mxu0
    %v405 = vadd.f32 0.0, %v404
    %406 = vmatmul.f32.gmra.mxu0 %v343
    %v407 = vpop.f32.mrf.mxu0
    %v408 = vadd.f32 0.0, %v407
    %409 = vmatmul.f32.gmra.mxu0 %v346
    %v410 = vpop.f32.mrf.mxu0
    %v411 = vadd.f32 0.0, %v410
    %412 = vmatmul.f32.gmra.mxu0 %v349
    %v413 = vpop.f32.mrf.mxu0
    %v414 = vadd.f32 0.0, %v413
    %415 = vmatmul.f32.gmra.mxu0 %v352
    %v416 = vpop.f32.mrf.mxu0
    %v417 = vadd.f32 0.0, %v416
    %418 = vmatmul.f32.gmra.mxu0 %v355
    %v419 = vpop.f32.mrf.mxu0
    %v420 = vadd.f32 0.0, %v419
    %421 = vmatmul.f32.gmra.mxu0 %v358
    %v422 = vpop.f32.mrf.mxu0
    %v423 = vadd.f32 0.0, %v422
    %424 = vmatmul.f32.gmra.mxu0 %v361
    %v425 = vpop.f32.mrf.mxu0
    %v426 = vadd.f32 0.0, %v425
    %427 = vmatmul.f32.gmra.mxu0 %v364
    %v428 = vpop.f32.mrf.mxu0
    %v429 = vadd.f32 0.0, %v428
    %430 = vdwg.mxu0
    %431 = vmatpush.msra.mxu0 %v429
    %432 = vmatpush.msra.mxu0 %v426
    %433 = vmatpush.msra.mxu0 %v423
    %434 = vmatpush.msra.mxu0 %v420
    %435 = vmatpush.msra.mxu0 %v417
    %436 = vmatpush.msra.mxu0 %v414
    %437 = vmatpush.msra.mxu0 %v411
    %438 = vmatpush.msra.mxu0 %v408
    %439 = vmatpush.msra.mxu0 %v405
    %440 = vmatpush.msra.mxu0 %v402
    %441 = vmatpush.msra.mxu0 %v399
    %442 = vmatpush.msra.mxu0 %v396
    %443 = vmatpush.msra.mxu0 %v393
    %444 = vmatpush.msra.mxu0 %v390
    %445 = vmatpush.msra.mxu0 %v387
    %446 = vmatpush.msra.mxu0 %v384
    %447 = vmatmul.f32.gmra.mxu0 %v384
    %v448 = vpop.f32.mrf.mxu0
    %v449 = vadd.f32 0.0, %v448
    %450 = vmatmul.f32.gmra.mxu0 %v387
    %v451 = vpop.f32.mrf.mxu0
    %v452 = vadd.f32 0.0, %v451
    %453 = vmatmul.f32.gmra.mxu0 %v390
    %v454 = vpop.f32.mrf.mxu0
    %v455 = vadd.f32 0.0, %v454
    %456 = vmatmul.f32.gmra.mxu0 %v393
    %v457 = vpop.f32.mrf.mxu0
    %v458 = vadd.f32 0.0, %v457
    %459 = vmatmul.f32.gmra.mxu0 %v396
    %v460 = vpop.f32.mrf.mxu0
    %v461 = vadd.f32 0.0, %v460
    %462 = vmatmul.f32.gmra.mxu0 %v399
    %v463 = vpop.f32.mrf.mxu0
    %v464 = vadd.f32 0.0, %v463
    %465 = vmatmul.f32.gmra.mxu0 %v402
    %v466 = vpop.f32.mrf.mxu0
    %v467 = vadd.f32 0.0, %v466
    %468 = vmatmul.f32.gmra.mxu0 %v405
    %v469 = vpop.f32.mrf.mxu0
    %v470 = vadd.f32 0.0, %v469
    %471 = vmatmul.f32.gmra.mxu0 %v408
    %v472 = vpop.f32.mrf.mxu0
    %v473 = vadd.f32 0.0, %v472
    %474 = vmatmul.f32.gmra.mxu0 %v411
    %v475 = vpop.f32.mrf.mxu0
    %v476 = vadd.f32 0.0, %v475
    %477 = vmatmul.f32.gmra.mxu0 %v414
    %v478 = vpop.f32.mrf.mxu0
    %v479 = vadd.f32 0.0, %v478
    %480 = vmatmul.f32.gmra.mxu0 %v417
    %v481 = vpop.f32.mrf.mxu0
    %v482 = vadd.f32 0.0, %v481
    %483 = vmatmul.f32.gmra.mxu0 %v420
    %v484 = vpop.f32.mrf.mxu0
    %v485 = vadd.f32 0.0, %v484
    %486 = vmatmul.f32.gmra.mxu0 %v423
    %v487 = vpop.f32.mrf.mxu0
    %v488 = vadd.f32 0.0, %v487
    %489 = vmatmul.f32.gmra.mxu0 %v426
    %v490 = vpop.f32.mrf.mxu0
    %v491 = vadd.f32 0.0, %v490
    %492 = vmatmul.f32.gmra.mxu0 %v429
    %v493 = vpop.f32.mrf.mxu0
    %v494 = vadd.f32 0.0, %v493
    %495 = vdwg.mxu0
    %496 = vmatpush.msra.mxu0 %v494
    %497 = vmatpush.msra.mxu0 %v491
    %498 = vmatpush.msra.mxu0 %v488
    %499 = vmatpush.msra.mxu0 %v485
    %500 = vmatpush.msra.mxu0 %v482
    %501 = vmatpush.msra.mxu0 %v479
    %502 = vmatpush.msra.mxu0 %v476
    %503 = vmatpush.msra.mxu0 %v473
    %504 = vmatpush.msra.mxu0 %v470
    %505 = vmatpush.msra.mxu0 %v467
    %506 = vmatpush.msra.mxu0 %v464
    %507 = vmatpush.msra.mxu0 %v461
    %508 = vmatpush.msra.mxu0 %v458
    %509 = vmatpush.msra.mxu0 %v455
    %510 = vmatpush.msra.mxu0 %v452
    %511 = vmatpush.msra.mxu0 %v449
    %512 = vmatmul.f32.gmra.mxu0 %v449
    %v513 = vpop.f32.mrf.mxu0
    %v514 = vadd.f32 0.0, %v513
    %515 = vmatmul.f32.gmra.mxu0 %v452
    %v516 = vpop.f32.mrf.mxu0
    %v517 = vadd.f32 0.0, %v516
    %518 = vmatmul.f32.gmra.mxu0 %v455
    %v519 = vpop.f32.mrf.mxu0
    %v520 = vadd.f32 0.0, %v519
    %521 = vmatmul.f32.gmra.mxu0 %v458
    %v522 = vpop.f32.mrf.mxu0
    %v523 = vadd.f32 0.0, %v522
    %524 = vmatmul.f32.gmra.mxu0 %v461
    %v525 = vpop.f32.mrf.mxu0
    %v526 = vadd.f32 0.0, %v525
    %527 = vmatmul.f32.gmra.mxu0 %v464
    %v528 = vpop.f32.mrf.mxu0
    %v529 = vadd.f32 0.0, %v528
    %530 = vmatmul.f32.gmra.mxu0 %v467
    %v531 = vpop.f32.mrf.mxu0
    %v532 = vadd.f32 0.0, %v531
    %533 = vmatmul.f32.gmra.mxu0 %v470
    %v534 = vpop.f32.mrf.mxu0
    %v535 = vadd.f32 0.0, %v534
    %536 = vmatmul.f32.gmra.mxu0 %v473
    %v537 = vpop.f32.mrf.mxu0
    %v538 = vadd.f32 0.0, %v537
    %539 = vmatmul.f32.gmra.mxu0 %v476
    %v540 = vpop.f32.mrf.mxu0
    %v541 = vadd.f32 0.0, %v540
    %542 = vmatmul.f32.gmra.mxu0 %v479
    %v543 = vpop.f32.mrf.mxu0
    %v544 = vadd.f32 0.0, %v543
    %545 = vmatmul.f32.gmra.mxu0 %v482
    %v546 = vpop.f32.mrf.mxu0
    %v547 = vadd.f32 0.0, %v546
    %548 = vmatmul.f32.gmra.mxu0 %v485
    %v549 = vpop.f32.mrf.mxu0
    %v550 = vadd.f32 0.0, %v549
    %551 = vmatmul.f32.gmra.mxu0 %v488
    %v552 = vpop.f32.mrf.mxu0
    %v553 = vadd.f32 0.0, %v552
    %554 = vmatmul.f32.gmra.mxu0 %v491
    %v555 = vpop.f32.mrf.mxu0
    %v556 = vadd.f32 0.0, %v555
    %557 = vmatmul.f32.gmra.mxu0 %v494
    %v558 = vpop.f32.mrf.mxu0
    %v559 = vadd.f32 0.0, %v558
    %560 = vdwg.mxu0
    %561 = vmatpush.msra.mxu0 %v559
    %562 = vmatpush.msra.mxu0 %v556
    %563 = vmatpush.msra.mxu0 %v553
    %564 = vmatpush.msra.mxu0 %v550
    %565 = vmatpush.msra.mxu0 %v547
    %566 = vmatpush.msra.mxu0 %v544
    %567 = vmatpush.msra.mxu0 %v541
    %568 = vmatpush.msra.mxu0 %v538
    %569 = vmatpush.msra.mxu0 %v535
    %570 = vmatpush.msra.mxu0 %v532
    %571 = vmatpush.msra.mxu0 %v529
    %572 = vmatpush.msra.mxu0 %v526
    %573 = vmatpush.msra.mxu0 %v523
    %574 = vmatpush.msra.mxu0 %v520
    %575 = vmatpush.msra.mxu0 %v517
    %576 = vmatpush.msra.mxu0 %v514
    %577 = vmatmul.f32.gmra.mxu0 %v514
    %v578 = vpop.f32.mrf.mxu0
    %v579 = vadd.f32 0.0, %v578
    %580 = vmatmul.f32.gmra.mxu0 %v517
    %v581 = vpop.f32.mrf.mxu0
    %v582 = vadd.f32 0.0, %v581
    %583 = vmatmul.f32.gmra.mxu0 %v520
    %v584 = vpop.f32.mrf.mxu0
    %v585 = vadd.f32 0.0, %v584
    %586 = vmatmul.f32.gmra.mxu0 %v523
    %v587 = vpop.f32.mrf.mxu0
    %v588 = vadd.f32 0.0, %v587
    %589 = vmatmul.f32.gmra.mxu0 %v526
    %v590 = vpop.f32.mrf.mxu0
    %v591 = vadd.f32 0.0, %v590
    %592 = vmatmul.f32.gmra.mxu0 %v529
    %v593 = vpop.f32.mrf.mxu0
    %v594 = vadd.f32 0.0, %v593
    %595 = vmatmul.f32.gmra.mxu0 %v532
    %v596 = vpop.f32.mrf.mxu0
    %v597 = vadd.f32 0.0, %v596
    %598 = vmatmul.f32.gmra.mxu0 %v535
    %v599 = vpop.f32.mrf.mxu0
    %v600 = vadd.f32 0.0, %v599
    %601 = vmatmul.f32.gmra.mxu0 %v538
    %v602 = vpop.f32.mrf.mxu0
    %v603 = vadd.f32 0.0, %v602
    %604 = vmatmul.f32.gmra.mxu0 %v541
    %v605 = vpop.f32.mrf.mxu0
    %v606 = vadd.f32 0.0, %v605
    %607 = vmatmul.f32.gmra.mxu0 %v544
    %v608 = vpop.f32.mrf.mxu0
    %v609 = vadd.f32 0.0, %v608
    %610 = vmatmul.f32.gmra.mxu0 %v547
    %v611 = vpop.f32.mrf.mxu0
    %v612 = vadd.f32 0.0, %v611
    %613 = vmatmul.f32.gmra.mxu0 %v550
    %v614 = vpop.f32.mrf.mxu0
    %v615 = vadd.f32 0.0, %v614
    %616 = vmatmul.f32.gmra.mxu0 %v553
    %v617 = vpop.f32.mrf.mxu0
    %v618 = vadd.f32 0.0, %v617
    %619 = vmatmul.f32.gmra.mxu0 %v556
    %v620 = vpop.f32.mrf.mxu0
    %v621 = vadd.f32 0.0, %v620
    %622 = vmatmul.f32.gmra.mxu0 %v559
    %v623 = vpop.f32.mrf.mxu0
    %v624 = vadd.f32 0.0, %v623
    %625 = vdwg.mxu0
    %626 = vmatpush.msra.mxu0 %v364
    %627 = vmatpush.msra.mxu0 %v361
    %628 = vmatpush.msra.mxu0 %v358
    %629 = vmatpush.msra.mxu0 %v355
    %630 = vmatpush.msra.mxu0 %v352
    %631 = vmatpush.msra.mxu0 %v349
    %632 = vmatpush.msra.mxu0 %v346
    %633 = vmatpush.msra.mxu0 %v343
    %634 = vmatpush.msra.mxu0 %v340
    %635 = vmatpush.msra.mxu0 %v337
    %636 = vmatpush.msra.mxu0 %v334
    %637 = vmatpush.msra.mxu0 %v331
    %638 = vmatpush.msra.mxu0 %v328
    %639 = vmatpush.msra.mxu0 %v325
    %640 = vmatpush.msra.mxu0 %v322
    %641 = vmatpush.msra.mxu0 %v319
    %642 = vmatmul.f32.gmra.mxu0 %v189
    %v643 = vpop.f32.mrf.mxu0
    %v644 = vadd.f32 0.0, %v643
    %645 = vmatmul.f32.gmra.mxu0 %v192
    %v646 = vpop.f32.mrf.mxu0
    %v647 = vadd.f32 0.0, %v646
    %648 = vmatmul.f32.gmra.mxu0 %v195
    %v649 = vpop.f32.mrf.mxu0
    %v650 = vadd.f32 0.0, %v649
    %651 = vmatmul.f32.gmra.mxu0 %v198
    %v652 = vpop.f32.mrf.mxu0
    %v653 = vadd.f32 0.0, %v652
    %654 = vmatmul.f32.gmra.mxu0 %v201
    %v655 = vpop.f32.mrf.mxu0
    %v656 = vadd.f32 0.0, %v655
    %657 = vmatmul.f32.gmra.mxu0 %v204
    %v658 = vpop.f32.mrf.mxu0
    %v659 = vadd.f32 0.0, %v658
    %660 = vmatmul.f32.gmra.mxu0 %v207
    %v661 = vpop.f32.mrf.mxu0
    %v662 = vadd.f32 0.0, %v661
    %663 = vmatmul.f32.gmra.mxu0 %v210
    %v664 = vpop.f32.mrf.mxu0
    %v665 = vadd.f32 0.0, %v664
    %666 = vmatmul.f32.gmra.mxu0 %v213
    %v667 = vpop.f32.mrf.mxu0
    %v668 = vadd.f32 0.0, %v667
    %669 = vmatmul.f32.gmra.mxu0 %v216
    %v670 = vpop.f32.mrf.mxu0
    %v671 = vadd.f32 0.0, %v670
    %672 = vmatmul.f32.gmra.mxu0 %v219
    %v673 = vpop.f32.mrf.mxu0
    %v674 = vadd.f32 0.0, %v673
    %675 = vmatmul.f32.gmra.mxu0 %v222
    %v676 = vpop.f32.mrf.mxu0
    %v677 = vadd.f32 0.0, %v676
    %678 = vmatmul.f32.gmra.mxu0 %v225
    %v679 = vpop.f32.mrf.mxu0
    %v680 = vadd.f32 0.0, %v679
    %681 = vmatmul.f32.gmra.mxu0 %v228
    %v682 = vpop.f32.mrf.mxu0
    %v683 = vadd.f32 0.0, %v682
    %684 = vmatmul.f32.gmra.mxu0 %v231
    %v685 = vpop.f32.mrf.mxu0
    %v686 = vadd.f32 0.0, %v685
    %687 = vmatmul.f32.gmra.mxu0 %v234
    %v688 = vpop.f32.mrf.mxu0
    %v689 = vadd.f32 0.0, %v688
    %690 = vdwg.mxu0
    %691 = vmatpush.msra.mxu0 %v494
    %692 = vmatpush.msra.mxu0 %v491
    %693 = vmatpush.msra.mxu0 %v488
    %694 = vmatpush.msra.mxu0 %v485
    %695 = vmatpush.msra.mxu0 %v482
    %696 = vmatpush.msra.mxu0 %v479
    %697 = vmatpush.msra.mxu0 %v476
    %698 = vmatpush.msra.mxu0 %v473
    %699 = vmatpush.msra.mxu0 %v470
    %700 = vmatpush.msra.mxu0 %v467
    %701 = vmatpush.msra.mxu0 %v464
    %702 = vmatpush.msra.mxu0 %v461
    %703 = vmatpush.msra.mxu0 %v458
    %704 = vmatpush.msra.mxu0 %v455
    %705 = vmatpush.msra.mxu0 %v452
    %706 = vmatpush.msra.mxu0 %v449
    %707 = vmatmul.f32.gmra.mxu0 %v384
    %v708 = vpop.f32.mrf.mxu0
    %v709 = vadd.f32 0.0, %v708
    %710 = vmatmul.f32.gmra.mxu0 %v387
    %v711 = vpop.f32.mrf.mxu0
    %v712 = vadd.f32 0.0, %v711
    %713 = vmatmul.f32.gmra.mxu0 %v390
    %v714 = vpop.f32.mrf.mxu0
    %v715 = vadd.f32 0.0, %v714
    %716 = vmatmul.f32.gmra.mxu0 %v393
    %v717 = vpop.f32.mrf.mxu0
    %v718 = vadd.f32 0.0, %v717
    %719 = vmatmul.f32.gmra.mxu0 %v396
    %v720 = vpop.f32.mrf.mxu0
    %v721 = vadd.f32 0.0, %v720
    %722 = vmatmul.f32.gmra.mxu0 %v399
    %v723 = vpop.f32.mrf.mxu0
    %v724 = vadd.f32 0.0, %v723
    %725 = vmatmul.f32.gmra.mxu0 %v402
    %v726 = vpop.f32.mrf.mxu0
    %v727 = vadd.f32 0.0, %v726
    %728 = vmatmul.f32.gmra.mxu0 %v405
    %v729 = vpop.f32.mrf.mxu0
    %v730 = vadd.f32 0.0, %v729
    %731 = vmatmul.f32.gmra.mxu0 %v408
    %v732 = vpop.f32.mrf.mxu0
    %v733 = vadd.f32 0.0, %v732
    %734 = vmatmul.f32.gmra.mxu0 %v411
    %v735 = vpop.f32.mrf.mxu0
    %v736 = vadd.f32 0.0, %v735
    %737 = vmatmul.f32.gmra.mxu0 %v414
    %v738 = vpop.f32.mrf.mxu0
    %v739 = vadd.f32 0.0, %v738
    %740 = vmatmul.f32.gmra.mxu0 %v417
    %v741 = vpop.f32.mrf.mxu0
    %v742 = vadd.f32 0.0, %v741
    %743 = vmatmul.f32.gmra.mxu0 %v420
    %v744 = vpop.f32.mrf.mxu0
    %v745 = vadd.f32 0.0, %v744
    %746 = vmatmul.f32.gmra.mxu0 %v423
    %v747 = vpop.f32.mrf.mxu0
    %v748 = vadd.f32 0.0, %v747
    %749 = vmatmul.f32.gmra.mxu0 %v426
    %v750 = vpop.f32.mrf.mxu0
    %v751 = vadd.f32 0.0, %v750
    %752 = vmatmul.f32.gmra.mxu0 %v429
    %v753 = vpop.f32.mrf.mxu0
    %v754 = vadd.f32 0.0, %v753
    %755 = vdwg.mxu0
    %756 = vmatpush.msra.mxu0 %v624
    %757 = vmatpush.msra.mxu0 %v621
    %758 = vmatpush.msra.mxu0 %v618
    %759 = vmatpush.msra.mxu0 %v615
    %760 = vmatpush.msra.mxu0 %v612
    %761 = vmatpush.msra.mxu0 %v609
    %762 = vmatpush.msra.mxu0 %v606
    %763 = vmatpush.msra.mxu0 %v603
    %764 = vmatpush.msra.mxu0 %v600
    %765 = vmatpush.msra.mxu0 %v597
    %766 = vmatpush.msra.mxu0 %v594
    %767 = vmatpush.msra.mxu0 %v591
    %768 = vmatpush.msra.mxu0 %v588
    %769 = vmatpush.msra.mxu0 %v585
    %770 = vmatpush.msra.mxu0 %v582
    %771 = vmatpush.msra.mxu0 %v579
    %772 = vmatmul.f32.gmra.mxu0 %v514
    %v773 = vpop.f32.mrf.mxu0
    %v774 = vadd.f32 0.0, %v773
    %775 = vmatmul.f32.gmra.mxu0 %v517
    %v776 = vpop.f32.mrf.mxu0
    %v777 = vadd.f32 0.0, %v776
    %778 = vmatmul.f32.gmra.mxu0 %v520
    %v779 = vpop.f32.mrf.mxu0
    %v780 = vadd.f32 0.0, %v779
    %781 = vmatmul.f32.gmra.mxu0 %v523
    %v782 = vpop.f32.mrf.mxu0
    %v783 = vadd.f32 0.0, %v782
    %784 = vmatmul.f32.gmra.mxu0 %v526
    %v785 = vpop.f32.mrf.mxu0
    %v786 = vadd.f32 0.0, %v785
    %787 = vmatmul.f32.gmra.mxu0 %v529
    %v788 = vpop.f32.mrf.mxu0
    %v789 = vadd.f32 0.0, %v788
    %790 = vmatmul.f32.gmra.mxu0 %v532
    %v791 = vpop.f32.mrf.mxu0
    %v792 = vadd.f32 0.0, %v791
    %793 = vmatmul.f32.gmra.mxu0 %v535
    %v794 = vpop.f32.mrf.mxu0
    %v795 = vadd.f32 0.0, %v794
    %796 = vmatmul.f32.gmra.mxu0 %v538
    %v797 = vpop.f32.mrf.mxu0
    %v798 = vadd.f32 0.0, %v797
    %799 = vmatmul.f32.gmra.mxu0 %v541
    %v800 = vpop.f32.mrf.mxu0
    %v801 = vadd.f32 0.0, %v800
    %802 = vmatmul.f32.gmra.mxu0 %v544
    %v803 = vpop.f32.mrf.mxu0
    %v804 = vadd.f32 0.0, %v803
    %805 = vmatmul.f32.gmra.mxu0 %v547
    %v806 = vpop.f32.mrf.mxu0
    %v807 = vadd.f32 0.0, %v806
    %808 = vmatmul.f32.gmra.mxu0 %v550
    %v809 = vpop.f32.mrf.mxu0
    %v810 = vadd.f32 0.0, %v809
    %811 = vmatmul.f32.gmra.mxu0 %v553
    %v812 = vpop.f32.mrf.mxu0
    %v813 = vadd.f32 0.0, %v812
    %814 = vmatmul.f32.gmra.mxu0 %v556
    %v815 = vpop.f32.mrf.mxu0
    %v816 = vadd.f32 0.0, %v815
    %817 = vmatmul.f32.gmra.mxu0 %v559
    %v818 = vpop.f32.mrf.mxu0
    %v819 = vadd.f32 0.0, %v818
    %820 = vdwg.mxu0
    %821 = vmatpush.msra.mxu0 %v754
    %822 = vmatpush.msra.mxu0 %v751
    %823 = vmatpush.msra.mxu0 %v748
    %824 = vmatpush.msra.mxu0 %v745
    %825 = vmatpush.msra.mxu0 %v742
    %826 = vmatpush.msra.mxu0 %v739
    %827 = vmatpush.msra.mxu0 %v736
    %828 = vmatpush.msra.mxu0 %v733
    %829 = vmatpush.msra.mxu0 %v730
    %830 = vmatpush.msra.mxu0 %v727
    %831 = vmatpush.msra.mxu0 %v724
    %832 = vmatpush.msra.mxu0 %v721
    %833 = vmatpush.msra.mxu0 %v718
    %834 = vmatpush.msra.mxu0 %v715
    %835 = vmatpush.msra.mxu0 %v712
    %836 = vmatpush.msra.mxu0 %v709
    %837 = vmatmul.f32.gmra.mxu0 %v644
    %v838 = vpop.f32.mrf.mxu0
    %v839 = vadd.f32 0.0, %v838
    %840 = vmatmul.f32.gmra.mxu0 %v647
    %v841 = vpop.f32.mrf.mxu0
    %v842 = vadd.f32 0.0, %v841
    %843 = vmatmul.f32.gmra.mxu0 %v650
    %v844 = vpop.f32.mrf.mxu0
    %v845 = vadd.f32 0.0, %v844
    %846 = vmatmul.f32.gmra.mxu0 %v653
    %v847 = vpop.f32.mrf.mxu0
    %v848 = vadd.f32 0.0, %v847
    %849 = vmatmul.f32.gmra.mxu0 %v656
    %v850 = vpop.f32.mrf.mxu0
    %v851 = vadd.f32 0.0, %v850
    %852 = vmatmul.f32.gmra.mxu0 %v659
    %v853 = vpop.f32.mrf.mxu0
    %v854 = vadd.f32 0.0, %v853
    %855 = vmatmul.f32.gmra.mxu0 %v662
    %v856 = vpop.f32.mrf.mxu0
    %v857 = vadd.f32 0.0, %v856
    %858 = vmatmul.f32.gmra.mxu0 %v665
    %v859 = vpop.f32.mrf.mxu0
    %v860 = vadd.f32 0.0, %v859
    %861 = vmatmul.f32.gmra.mxu0 %v668
    %v862 = vpop.f32.mrf.mxu0
    %v863 = vadd.f32 0.0, %v862
    %864 = vmatmul.f32.gmra.mxu0 %v671
    %v865 = vpop.f32.mrf.mxu0
    %v866 = vadd.f32 0.0, %v865
    %867 = vmatmul.f32.gmra.mxu0 %v674
    %v868 = vpop.f32.mrf.mxu0
    %v869 = vadd.f32 0.0, %v868
    %870 = vmatmul.f32.gmra.mxu0 %v677
    %v871 = vpop.f32.mrf.mxu0
    %v872 = vadd.f32 0.0, %v871
    %873 = vmatmul.f32.gmra.mxu0 %v680
    %v874 = vpop.f32.mrf.mxu0
    %v875 = vadd.f32 0.0, %v874
    %876 = vmatmul.f32.gmra.mxu0 %v683
    %v877 = vpop.f32.mrf.mxu0
    %v878 = vadd.f32 0.0, %v877
    %879 = vmatmul.f32.gmra.mxu0 %v686
    %v880 = vpop.f32.mrf.mxu0
    %v881 = vadd.f32 0.0, %v880
    %882 = vmatmul.f32.gmra.mxu0 %v689
    %v883 = vpop.f32.mrf.mxu0
    %v884 = vadd.f32 0.0, %v883
    %885 = vdwg.mxu0
    %886 = vmatpush.msra.mxu0 %v819
    %887 = vmatpush.msra.mxu0 %v816
    %888 = vmatpush.msra.mxu0 %v813
    %889 = vmatpush.msra.mxu0 %v810
    %890 = vmatpush.msra.mxu0 %v807
    %891 = vmatpush.msra.mxu0 %v804
    %892 = vmatpush.msra.mxu0 %v801
    %893 = vmatpush.msra.mxu0 %v798
    %894 = vmatpush.msra.mxu0 %v795
    %895 = vmatpush.msra.mxu0 %v792
    %896 = vmatpush.msra.mxu0 %v789
    %897 = vmatpush.msra.mxu0 %v786
    %898 = vmatpush.msra.mxu0 %v783
    %899 = vmatpush.msra.mxu0 %v780
    %900 = vmatpush.msra.mxu0 %v777
    %901 = vmatpush.msra.mxu0 %v774
    %902 = vmatmul.f32.gmra.mxu0 %v839
    %v903 = vpop.f32.mrf.mxu0
    %v904 = vadd.f32 0.0, %v903
    %905 = vmatmul.f32.gmra.mxu0 %v842
    %v906 = vpop.f32.mrf.mxu0
    %v907 = vadd.f32 0.0, %v906
    %908 = vmatmul.f32.gmra.mxu0 %v845
    %v909 = vpop.f32.mrf.mxu0
    %v910 = vadd.f32 0.0, %v909
    %911 = vmatmul.f32.gmra.mxu0 %v848
    %v912 = vpop.f32.mrf.mxu0
    %v913 = vadd.f32 0.0, %v912
    %914 = vmatmul.f32.gmra.mxu0 %v851
    %v915 = vpop.f32.mrf.mxu0
    %v916 = vadd.f32 0.0, %v915
    %917 = vmatmul.f32.gmra.mxu0 %v854
    %v918 = vpop.f32.mrf.mxu0
    %v919 = vadd.f32 0.0, %v918
    %920 = vmatmul.f32.gmra.mxu0 %v857
    %v921 = vpop.f32.mrf.mxu0
    %v922 = vadd.f32 0.0, %v921
    %923 = vmatmul.f32.gmra.mxu0 %v860
    %v924 = vpop.f32.mrf.mxu0
    %v925 = vadd.f32 0.0, %v924
    %926 = vmatmul.f32.gmra.mxu0 %v863
    %v927 = vpop.f32.mrf.mxu0
    %v928 = vadd.f32 0.0, %v927
    %929 = vmatmul.f32.gmra.mxu0 %v866
    %v930 = vpop.f32.mrf.mxu0
    %v931 = vadd.f32 0.0, %v930
    %932 = vmatmul.f32.gmra.mxu0 %v869
    %v933 = vpop.f32.mrf.mxu0
    %v934 = vadd.f32 0.0, %v933
    %935 = vmatmul.f32.gmra.mxu0 %v872
    %v936 = vpop.f32.mrf.mxu0
    %v937 = vadd.f32 0.0, %v936
    %938 = vmatmul.f32.gmra.mxu0 %v875
    %v939 = vpop.f32.mrf.mxu0
    %v940 = vadd.f32 0.0, %v939
    %941 = vmatmul.f32.gmra.mxu0 %v878
    %v942 = vpop.f32.mrf.mxu0
    %v943 = vadd.f32 0.0, %v942
    %944 = vmatmul.f32.gmra.mxu0 %v881
    %v945 = vpop.f32.mrf.mxu0
    %v946 = vadd.f32 0.0, %v945
    %947 = vmatmul.f32.gmra.mxu0 %v884
    %v948 = vpop.f32.mrf.mxu0
    %v949 = vadd.f32 0.0, %v948
    %950 = vdwg.mxu0
    %951 = vst [vmem:[#allocation5] sm:$0xff] %v904
    %952 = vst [vmem:[#allocation5 + $0x8] sm:$0xff] %v907
    %953 = vst [vmem:[#allocation5 + $0x10] sm:$0xff] %v910
    %954 = vst [vmem:[#allocation5 + $0x18] sm:$0xff] %v913
    %955 = vst [vmem:[#allocation5 + $0x20] sm:$0xff] %v916
    %956 = vst [vmem:[#allocation5 + $0x28] sm:$0xff] %v919
    %957 = vst [vmem:[#allocation5 + $0x30] sm:$0xff] %v922
    %958 = vst [vmem:[#allocation5 + $0x38] sm:$0xff] %v925
    %959 = vst [vmem:[#allocation5 + $0x40] sm:$0xff] %v928
    %960 = vst [vmem:[#allocation5 + $0x48] sm:$0xff] %v931
    %961 = vst [vmem:[#allocation5 + $0x50] sm:$0xff] %v934
    %962 = vst [vmem:[#allocation5 + $0x58] sm:$0xff] %v937
    %963 = vst [vmem:[#allocation5 + $0x60] sm:$0xff] %v940
    %964 = vst [vmem:[#allocation5 + $0x68] sm:$0xff] %v943
    %965 = vst [vmem:[#allocation5 + $0x70] sm:$0xff] %v946
    %966 = vst [vmem:[#allocation5 + $0x78] sm:$0xff] %v949
    // Predicated region
    $region10: #{compute_adjacency_power.1} parent=1 // pred_check
      _
    $region11: #{compute_adjacency_power.1} parent=1 // pred_check_branch
      %968 = sbr.rel (0) target = $region13
    $region12: #{compute_adjacency_power.1} parent=1 // pred_region
      %970 = vsyncadd [#allocation4], 0
      %s971 = sshll.u32 [#allocation5], 4
      %s972 = int_to_ptr.vmem [resolvable:$true] %s971
      %s973 = sshll.u32 %s1, 4
      %s974 = int_to_ptr.hbm [resolvable:$true] %s973
      %979 = dma.vmem_to_hbm [thread:$0]  %s972, 2048, %s974, [#allocation4], 128, 128, 8
    $region13: #{compute_adjacency_power.1} parent=1 // pred_fallthru
      _
    // Predicated region
    $region14: #{compute_adjacency_power.1} parent=1 // pred_check
      _
    $region15: #{compute_adjacency_power.1} parent=1 // pred_check_branch
      %981 = sbr.rel (0) target = $region17
    $region16: #{compute_adjacency_power.1} parent=1 // pred_region
      %983 = dma.done [#allocation4], 2048
    $region17: #{compute_adjacency_power.1} parent=1 // pred_fallthru
      _
    %984 = vsyncpa [#allocation3], 1
    %985 = vsyncpa [#allocation4], 1

</llo_original>
